<compile_context>
chip_gen: v5e
topology: v5e:2x2
jax: 0.10.0
libtpu: 0.0.40
codegen_flags: <defaults>
</compile_context>

<pallas_src>
import functools

import jax
import jax.numpy as jnp
from jax.experimental import pallas as pl
from jax.experimental.pallas import tpu as pltpu


def _round_up(x: int, m: int) -> int:
    return ((x + m - 1) // m) * m


# -----------------------------------------------------------------------------
# Kernel 1: norm1 + multi-head attention + output projection (one batch / step)
# -----------------------------------------------------------------------------
def _attn_kernel(x_ref, g1_ref, b1_ref, wqkv_ref, wp_ref, bp_ref, o_ref,
                 *, num_heads, head_dim, in_dim, scale, eps):
    x = x_ref[0].astype(jnp.float32)                       # (N, dim)

    # LayerNorm over `dim` in f32 (biased variance, matching torch LayerNorm).
    mean = jnp.mean(x, axis=-1, keepdims=True)
    var = jnp.mean(x * x, axis=-1, keepdims=True) - mean * mean
    xn = (x - mean) * jax.lax.rsqrt(var + eps)
    xn = xn * g1_ref[...] + b1_ref[...]

    # qkv projection (qkv_bias=False):  (N, dim) @ (dim, 3*in_dim) -> f32 acc.
    qkv = jnp.dot(xn.astype(wqkv_ref.dtype), wqkv_ref[...],
                  preferred_element_type=jnp.float32)       # (N, 3*in_dim)

    # Per-head attention, unrolled (head count is small for T2T-ViT).  The
    # output projection is accumulated per head (attn_out @ Wp == sum_h of
    # o_h @ Wp[h*hd:(h+1)*hd, :]), avoiding an in-kernel concatenate.
    acc = None
    for h in range(num_heads):
        q = qkv[:, h * head_dim:(h + 1) * head_dim]
        k = qkv[:, in_dim + h * head_dim:in_dim + (h + 1) * head_dim]
        v = qkv[:, 2 * in_dim + h * head_dim:2 * in_dim + (h + 1) * head_dim]
        s = jax.lax.dot_general(q, k, (((1,), (1,)), ((), ())),
                                preferred_element_type=jnp.float32) * scale
        s = s - jnp.max(s, axis=-1, keepdims=True)
        e = jnp.exp(s)
        p = e / jnp.sum(e, axis=-1, keepdims=True)
        o_h = jnp.dot(p.astype(v.dtype), v,
                      preferred_element_type=jnp.float32)   # (N, head_dim)
        part = jnp.dot(o_h.astype(wp_ref.dtype),
                       wp_ref[h * head_dim:(h + 1) * head_dim, :],
                       preferred_element_type=jnp.float32)  # (N, in_dim)
        acc = part if acc is None else acc + part

    o_ref[0] = (acc + bp_ref[...]).astype(o_ref.dtype)


def _attention_pallas(x, g1, b1, wqkv, wp, bp, *, num_heads, in_dim, scale,
                      eps, compute_dtype=None):
    B, N, dim = x.shape
    head_dim = in_dim // num_heads
    cdt = compute_dtype or x.dtype

    kern = functools.partial(_attn_kernel, num_heads=num_heads,
                             head_dim=head_dim, in_dim=in_dim,
                             scale=scale, eps=eps)

    flops = (2 * B * N * dim * 3 * in_dim                 # qkv
             + 4 * B * num_heads * N * N * head_dim       # qk^T + attn@v
             + 2 * B * N * in_dim * in_dim)               # proj
    bytes_accessed = (B * N * (dim + in_dim) * 4
                      + (dim * 3 * in_dim + in_dim * in_dim) * 4)

    return pl.pallas_call(
        kern,
        out_shape=jax.ShapeDtypeStruct((B, N, in_dim), x.dtype),
        grid_spec=pltpu.PrefetchScalarGridSpec(
            num_scalar_prefetch=0,
            grid=(B,),
            in_specs=[
                pl.BlockSpec((1, N, dim), lambda b: (b, 0, 0)),      # x (per batch)
                pl.BlockSpec((1, dim), lambda b: (0, 0)),            # norm1 gamma
                pl.BlockSpec((1, dim), lambda b: (0, 0)),            # norm1 beta
                pl.BlockSpec((dim, 3 * in_dim), lambda b: (0, 0)),   # qkv weight
                pl.BlockSpec((in_dim, in_dim), lambda b: (0, 0)),    # proj weight
                pl.BlockSpec((1, in_dim), lambda b: (0, 0)),         # proj bias
            ],
            out_specs=pl.BlockSpec((1, N, in_dim), lambda b: (b, 0, 0)),
        ),
        compiler_params=pltpu.CompilerParams(
            dimension_semantics=("parallel",)),
        cost_estimate=pl.CostEstimate(
            flops=flops,
            transcendentals=B * num_heads * N * N,
            bytes_accessed=bytes_accessed),
    )(x.astype(cdt), g1.reshape(1, dim).astype(jnp.float32),
      b1.reshape(1, dim).astype(jnp.float32),
      wqkv.astype(cdt), wp.astype(cdt),
      bp.reshape(1, in_dim).astype(jnp.float32))


# -----------------------------------------------------------------------------
# Kernel 2: norm2 + fc1 + GELU + fc2 + residual add, token-tiled & lane-dense
# -----------------------------------------------------------------------------
def _mlp_res_kernel(a_ref, g2_ref, bt2_ref, w1_ref, b1_ref, w2_ref, b2_ref,
                    o_ref, *, c_true, eps):
    a = a_ref[...].astype(jnp.float32)                      # (tm, Cp), padded cols = 0

    # LayerNorm over the true feature count (padded columns are zero, so the
    # raw sums already only cover real features; divide by the true count).
    inv_c = 1.0 / c_true
    s1 = jnp.sum(a, axis=-1, keepdims=True)
    s2 = jnp.sum(a * a, axis=-1, keepdims=True)
    mean = s1 * inv_c
    var = s2 * inv_c - mean * mean
    xn = (a - mean) * jax.lax.rsqrt(var + eps)
    xn = xn * g2_ref[...] + bt2_ref[...]                    # padded cols -> exactly 0

    h = jnp.dot(xn.astype(w1_ref.dtype), w1_ref[...],
                preferred_element_type=jnp.float32) + b1_ref[...]
    h = jax.nn.gelu(h, approximate=False)                   # exact erf (torch default)
    y = jnp.dot(h.astype(w2_ref.dtype), w2_ref[...],
                preferred_element_type=jnp.float32) + b2_ref[...]

    o_ref[...] = (a + y).astype(o_ref.dtype)                # residual: a + mlp(norm2(a))


def _mlp_residual_pallas(a, g2, bt2, w1, b1, w2, b2, *, eps, tm_max=512,
                         compute_dtype=None):
    B, N, C = a.shape
    H = w1.shape[1]
    M = B * N
    cdt = compute_dtype or a.dtype
    wbytes = jnp.dtype(cdt).itemsize

    # Lane-dense feature padding (multiples of 128) and row padding to the tile.
    Cp = _round_up(C, 128)
    Hp = _round_up(H, 128)
    tm = min(tm_max, _round_up(M, 8))        # collapse grid for tiny problems
    Mp = _round_up(M, tm)

    a2 = jnp.zeros((Mp, Cp), cdt).at[:M, :C].set(a.reshape(M, C).astype(cdt))
    g2p = jnp.zeros((1, Cp), jnp.float32).at[0, :C].set(g2.astype(jnp.float32))
    bt2p = jnp.zeros((1, Cp), jnp.float32).at[0, :C].set(bt2.astype(jnp.float32))
    w1p = jnp.zeros((Cp, Hp), cdt).at[:C, :H].set(w1.astype(cdt))
    b1p = jnp.zeros((1, Hp), jnp.float32).at[0, :H].set(b1.astype(jnp.float32))
    w2p = jnp.zeros((Hp, Cp), cdt).at[:H, :C].set(w2.astype(cdt))
    b2p = jnp.zeros((1, Cp), jnp.float32).at[0, :C].set(b2.astype(jnp.float32))

    kern = functools.partial(_mlp_res_kernel, c_true=float(C), eps=eps)

    # Rough VMEM budget: double-buffered activations + (double-buffered)
    # resident weights + f32 hidden temporary.  Only raise the scoped limit
    # when the default would be exceeded (important on v7x: 64 MiB physical).
    est_vmem = (2 * tm * Cp * wbytes + 2 * tm * Cp * a.dtype.itemsize
                + 2 * (Cp * Hp + Hp * Cp) * wbytes + 4 * tm * Hp + (1 << 20))
    cp_kwargs = dict(dimension_semantics=("parallel",))
    if est_vmem > 24 * 1024 * 1024:
        cp_kwargs["vmem_limit_bytes"] = int(min(est_vmem * 3 // 2, 64 * 1024 * 1024))

    out = pl.pallas_call(
        kern,
        out_shape=jax.ShapeDtypeStruct((Mp, Cp), a.dtype),
        grid_spec=pltpu.PrefetchScalarGridSpec(
            num_scalar_prefetch=0,
            grid=(Mp // tm,),
            in_specs=[
                pl.BlockSpec((tm, Cp), lambda i: (i, 0)),    # tokens (residual input)
                pl.BlockSpec((1, Cp), lambda i: (0, 0)),     # norm2 gamma
                pl.BlockSpec((1, Cp), lambda i: (0, 0)),     # norm2 beta
                pl.BlockSpec((Cp, Hp), lambda i: (0, 0)),    # fc1 weight (resident)
                pl.BlockSpec((1, Hp), lambda i: (0, 0)),     # fc1 bias
                pl.BlockSpec((Hp, Cp), lambda i: (0, 0)),    # fc2 weight (resident)
                pl.BlockSpec((1, Cp), lambda i: (0, 0)),     # fc2 bias
            ],
            out_specs=pl.BlockSpec((tm, Cp), lambda i: (i, 0)),
        ),
        compiler_params=pltpu.CompilerParams(**cp_kwargs),
        cost_estimate=pl.CostEstimate(
            flops=4 * Mp * Cp * Hp,
            transcendentals=Mp * Hp,
            bytes_accessed=(a2.size + w1p.size + w2p.size) * wbytes
                           + Mp * Cp * a.dtype.itemsize),
    )(a2, g2p, bt2p, w1p, b1p, w2p, b2p)

    return out[:M, :C].reshape(B, N, C)


# -----------------------------------------------------------------------------
# Full Token_transformer forward
# -----------------------------------------------------------------------------
def token_transformer_pallas(x, params, *, num_heads, compute_dtype=None,
                             tm_max=512, eps=1e-5):
    """x: (B, N, dim).  Weights stored transposed (in, out).  Returns (B, N, in_dim)."""
    dim = x.shape[-1]
    in_dim = params["proj_w"].shape[0]
    assert in_dim % num_heads == 0 and dim // num_heads > 0
    scale = float((dim // num_heads) ** -0.5)   # torch: head_dim = dim // num_heads

    a = _attention_pallas(
        x, params["norm1_g"], params["norm1_b"], params["qkv_w"],
        params["proj_w"], params["proj_b"],
        num_heads=num_heads, in_dim=in_dim, scale=scale, eps=eps,
        compute_dtype=compute_dtype)

    return _mlp_residual_pallas(
        a, params["norm2_g"], params["norm2_b"],
        params["fc1_w"], params["fc1_b"], params["fc2_w"], params["fc2_b"],
        eps=eps, tm_max=tm_max, compute_dtype=compute_dtype)


# -----------------------------------------------------------------------------
# Pure-JAX reference (mirrors the PyTorch module)
# -----------------------------------------------------------------------------
def _layernorm_ref(x, g, b, eps):
    mean = jnp.mean(x, axis=-1, keepdims=True)
    var = jnp.mean((x - mean) ** 2, axis=-1, keepdims=True)
    return (x - mean) / jnp.sqrt(var + eps) * g + b


def token_transformer_reference(x, params, *, num_heads, eps=1e-5):
    B, N, dim = x.shape
    in_dim = params["proj_w"].shape[0]
    head_dim = in_dim // num_heads
    scale = (dim // num_heads) ** -0.5

    h = _layernorm_ref(x, params["norm1_g"], params["norm1_b"], eps)
    qkv = h @ params["qkv_w"]
    qkv = qkv.reshape(B, N, 3, num_heads, head_dim).transpose(2, 0, 3, 1, 4)
    q, k, v = qkv[0], qkv[1], qkv[2]
    attn = jax.nn.softmax((q @ jnp.swapaxes(k, -2, -1)) * scale, axis=-1)
    a = (attn @ v).transpose(0, 2, 1, 3).reshape(B, N, in_dim)
    a = a @ params["proj_w"] + params["proj_b"]

    m = _layernorm_ref(a, params["norm2_g"], params["norm2_b"], eps)
    m = m @ params["fc1_w"] + params["fc1_b"]
    m = jax.nn.gelu(m, approximate=False)
    m = m @ params["fc2_w"] + params["fc2_b"]
    return a + m


if __name__ == "__main__":
    # Small shapes consistent with the module: Token_transformer(dim, in_dim,
    # num_heads) with mlp_ratio=1.0  ->  hidden = in_dim.
    B, N = 2, 16
    dim, in_dim, num_heads = 48, 64, 4
    hidden = int(in_dim * 1.0)

    key = jax.random.PRNGKey(0)
    ks = jax.random.split(key, 12)

    def init(k, shape, s=0.05):
        return jax.random.normal(k, shape, dtype=jnp.float32) * s

    x = jax.random.normal(ks[0], (B, N, dim), dtype=jnp.float32)
    params = {
        "norm1_g": jnp.ones((dim,), jnp.float32) + init(ks[1], (dim,)),
        "norm1_b": init(ks[2], (dim,)),
        "qkv_w": init(ks[3], (dim, 3 * in_dim)),         # qkv_bias=False
        "proj_w": init(ks[4], (in_dim, in_dim)),
        "proj_b": init(ks[5], (in_dim,)),
        "norm2_g": jnp.ones((in_dim,), jnp.float32) + init(ks[6], (in_dim,)),
        "norm2_b": init(ks[7], (in_dim,)),
        "fc1_w": init(ks[8], (in_dim, hidden)),
        "fc1_b": init(ks[9], (hidden,)),
        "fc2_w": init(ks[10], (hidden, in_dim)),
        "fc2_b": init(ks[11], (in_dim,)),
    }

    ref = token_transformer_reference(x, params, num_heads=num_heads)

    # f32 path (exact-match numerics vs the reference).
    out = token_transformer_pallas(x, params, num_heads=num_heads)
    out = jax.block_until_ready(out)
    assert out.shape == (B, N, in_dim)
    err = float(jnp.max(jnp.abs(out - ref)))
    assert jnp.allclose(out, ref, atol=2e-3, rtol=2e-3), f"f32 mismatch {err}"

    # bf16 compute path (v6e/v7x MXU peak): bf16 operands, f32 accumulation.
    out_bf16 = token_transformer_pallas(x, params, num_heads=num_heads,
                                        compute_dtype=jnp.bfloat16)
    out_bf16 = jax.block_until_ready(out_bf16)
    err_bf16 = float(jnp.max(jnp.abs(out_bf16 - ref)))
    assert jnp.allclose(out_bf16, ref, atol=5e-2, rtol=5e-2), f"bf16 mismatch {err_bf16}"

    print("KERNEL_OK")
</pallas_src>

<mosaic_0001>
module attributes {stable_mosaic.version = 11 : i64} {
  func.func @_attn_kernel(%arg0: i32, %arg1: memref<1x16x48xf32, #tpu.memory_space<vmem>>, %arg2: memref<1x48xf32, #tpu.memory_space<vmem>>, %arg3: memref<1x48xf32, #tpu.memory_space<vmem>>, %arg4: memref<48x192xf32, #tpu.memory_space<vmem>>, %arg5: memref<64x64xf32, #tpu.memory_space<vmem>>, %arg6: memref<1x64xf32, #tpu.memory_space<vmem>>, %arg7: memref<1x16x64xf32, #tpu.memory_space<vmem>>) attributes {dimension_semantics = [#tpu.dimension_semantics<parallel>], iteration_bounds = array<i64: 2>, scalar_prefetch = 0 : i64, scratch_operands = 0 : i64, tpu.core_type = #tpu.core_type<tc>, window_params = [{transform_indices = @transform_0, window_bounds = array<i64: 1, 16, 48>}, {pipeline_mode = #tpu.pipeline_mode<synchronous>, transform_indices = @transform_1, window_bounds = array<i64: 1, 48>}, {pipeline_mode = #tpu.pipeline_mode<synchronous>, transform_indices = @transform_2, window_bounds = array<i64: 1, 48>}, {pipeline_mode = #tpu.pipeline_mode<synchronous>, transform_indices = @transform_3, window_bounds = array<i64: 48, 192>}, {pipeline_mode = #tpu.pipeline_mode<synchronous>, transform_indices = @transform_4, window_bounds = array<i64: 64, 64>}, {pipeline_mode = #tpu.pipeline_mode<synchronous>, transform_indices = @transform_5, window_bounds = array<i64: 1, 64>}, {transform_indices = @transform_6, window_bounds = array<i64: 1, 16, 64>}]} {
    %c0 = arith.constant 0 : index
    %c0_0 = arith.constant 0 : index
    %c0_1 = arith.constant 0 : index
    %0 = vector.load %arg1[%c0, %c0_0, %c0_1] : memref<1x16x48xf32, #tpu.memory_space<vmem>>, vector<1x16x48xf32>
    %1 = vector.shape_cast %0 : vector<1x16x48xf32> to vector<16x48xf32>
    %cst = arith.constant dense<0.000000e+00> : vector<16xf32>
    %2 = vector.multi_reduction <add>, %1, %cst [1] : vector<16x48xf32> to vector<16xf32>
    %3 = vector.shape_cast %2 : vector<16xf32> to vector<16x1xf32>
    %cst_2 = arith.constant 4.800000e+01 : f32
    %4 = vector.broadcast %cst_2 : f32 to vector<16x1xf32>
    %5 = arith.divf %3, %4 : vector<16x1xf32>
    %6 = arith.mulf %1, %1 : vector<16x48xf32>
    %cst_3 = arith.constant dense<0.000000e+00> : vector<16xf32>
    %7 = vector.multi_reduction <add>, %6, %cst_3 [1] : vector<16x48xf32> to vector<16xf32>
    %8 = vector.shape_cast %7 : vector<16xf32> to vector<16x1xf32>
    %cst_4 = arith.constant 4.800000e+01 : f32
    %9 = vector.broadcast %cst_4 : f32 to vector<16x1xf32>
    %10 = arith.divf %8, %9 : vector<16x1xf32>
    %11 = arith.mulf %5, %5 : vector<16x1xf32>
    %12 = arith.subf %10, %11 : vector<16x1xf32>
    %13 = vector.broadcast %5 : vector<16x1xf32> to vector<16x48xf32>
    %14 = arith.subf %1, %13 : vector<16x48xf32>
    %cst_5 = arith.constant 9.99999974E-6 : f32
    %15 = vector.broadcast %cst_5 : f32 to vector<16x1xf32>
    %16 = arith.addf %12, %15 : vector<16x1xf32>
    %17 = math.rsqrt %16 : vector<16x1xf32>
    %18 = vector.broadcast %17 : vector<16x1xf32> to vector<16x48xf32>
    %19 = arith.mulf %14, %18 : vector<16x48xf32>
    %c0_6 = arith.constant 0 : index
    %c0_7 = arith.constant 0 : index
    %20 = vector.load %arg2[%c0_6, %c0_7] : memref<1x48xf32, #tpu.memory_space<vmem>>, vector<1x48xf32>
    %21 = vector.broadcast %20 : vector<1x48xf32> to vector<16x48xf32>
    %22 = arith.mulf %19, %21 : vector<16x48xf32>
    %c0_8 = arith.constant 0 : index
    %c0_9 = arith.constant 0 : index
    %23 = vector.load %arg3[%c0_8, %c0_9] : memref<1x48xf32, #tpu.memory_space<vmem>>, vector<1x48xf32>
    %24 = vector.broadcast %23 : vector<1x48xf32> to vector<16x48xf32>
    %25 = arith.addf %22, %24 : vector<16x48xf32>
    %c0_10 = arith.constant 0 : index
    %c0_11 = arith.constant 0 : index
    %26 = vector.load %arg4[%c0_10, %c0_11] : memref<48x192xf32, #tpu.memory_space<vmem>>, vector<48x192xf32>
    %cst_12 = arith.constant dense<0.000000e+00> : vector<16x192xf32>
    %27 = tpu.matmul %25, %26, %cst_12 {dimension_numbers = #tpu.dot_dimension_numbers<[1], [0], [0], [1], [0, 0, 1, 1], [], []>} : vector<16x48xf32>, vector<48x192xf32>, vector<16x192xf32> -> vector<16x192xf32>
    %28 = vector.extract_strided_slice %27 {offsets = [0, 0], sizes = [16, 16], strides = [1, 1]} : vector<16x192xf32> to vector<16x16xf32>
    %29 = vector.extract_strided_slice %27 {offsets = [0, 64], sizes = [16, 16], strides = [1, 1]} : vector<16x192xf32> to vector<16x16xf32>
    %30 = vector.extract_strided_slice %27 {offsets = [0, 128], sizes = [16, 16], strides = [1, 1]} : vector<16x192xf32> to vector<16x16xf32>
    %cst_13 = arith.constant dense<0.000000e+00> : vector<16x16xf32>
    %31 = tpu.matmul %28, %29, %cst_13 {dimension_numbers = #tpu.dot_dimension_numbers<[1], [1], [0], [0], [0, 0, 1, 0], [], []>} : vector<16x16xf32>, vector<16x16xf32>, vector<16x16xf32> -> vector<16x16xf32>
    %cst_14 = arith.constant 0.288675129 : f32
    %32 = vector.broadcast %cst_14 : f32 to vector<16x16xf32>
    %33 = arith.mulf %31, %32 : vector<16x16xf32>
    %cst_15 = arith.constant dense<0xFF800000> : vector<16xf32>
    %34 = vector.multi_reduction <maximumf>, %33, %cst_15 [1] : vector<16x16xf32> to vector<16xf32>
    %35 = vector.shape_cast %34 : vector<16xf32> to vector<16x1xf32>
    %36 = vector.broadcast %35 : vector<16x1xf32> to vector<16x16xf32>
    %37 = arith.subf %33, %36 : vector<16x16xf32>
    %38 = math.exp %37 : vector<16x16xf32>
    %cst_16 = arith.constant dense<0.000000e+00> : vector<16xf32>
    %39 = vector.multi_reduction <add>, %38, %cst_16 [1] : vector<16x16xf32> to vector<16xf32>
    %40 = vector.shape_cast %39 : vector<16xf32> to vector<16x1xf32>
    %41 = vector.broadcast %40 : vector<16x1xf32> to vector<16x16xf32>
    %42 = arith.divf %38, %41 : vector<16x16xf32>
    %cst_17 = arith.constant dense<0.000000e+00> : vector<16x16xf32>
    %43 = tpu.matmul %42, %30, %cst_17 {dimension_numbers = #tpu.dot_dimension_numbers<[1], [0], [0], [1], [0, 0, 1, 1], [], []>} : vector<16x16xf32>, vector<16x16xf32>, vector<16x16xf32> -> vector<16x16xf32>
    %c0_18 = arith.constant 0 : index
    %c0_19 = arith.constant 0 : index
    %44 = vector.load %arg5[%c0_18, %c0_19] : memref<64x64xf32, #tpu.memory_space<vmem>>, vector<16x64xf32>
    %cst_20 = arith.constant dense<0.000000e+00> : vector<16x64xf32>
    %45 = tpu.matmul %43, %44, %cst_20 {dimension_numbers = #tpu.dot_dimension_numbers<[1], [0], [0], [1], [0, 0, 1, 1], [], []>} : vector<16x16xf32>, vector<16x64xf32>, vector<16x64xf32> -> vector<16x64xf32>
    %46 = vector.extract_strided_slice %27 {offsets = [0, 16], sizes = [16, 16], strides = [1, 1]} : vector<16x192xf32> to vector<16x16xf32>
    %47 = vector.extract_strided_slice %27 {offsets = [0, 80], sizes = [16, 16], strides = [1, 1]} : vector<16x192xf32> to vector<16x16xf32>
    %48 = vector.extract_strided_slice %27 {offsets = [0, 144], sizes = [16, 16], strides = [1, 1]} : vector<16x192xf32> to vector<16x16xf32>
    %cst_21 = arith.constant dense<0.000000e+00> : vector<16x16xf32>
    %49 = tpu.matmul %46, %47, %cst_21 {dimension_numbers = #tpu.dot_dimension_numbers<[1], [1], [0], [0], [0, 0, 1, 0], [], []>} : vector<16x16xf32>, vector<16x16xf32>, vector<16x16xf32> -> vector<16x16xf32>
    %cst_22 = arith.constant 0.288675129 : f32
    %50 = vector.broadcast %cst_22 : f32 to vector<16x16xf32>
    %51 = arith.mulf %49, %50 : vector<16x16xf32>
    %cst_23 = arith.constant dense<0xFF800000> : vector<16xf32>
    %52 = vector.multi_reduction <maximumf>, %51, %cst_23 [1] : vector<16x16xf32> to vector<16xf32>
    %53 = vector.shape_cast %52 : vector<16xf32> to vector<16x1xf32>
    %54 = vector.broadcast %53 : vector<16x1xf32> to vector<16x16xf32>
    %55 = arith.subf %51, %54 : vector<16x16xf32>
    %56 = math.exp %55 : vector<16x16xf32>
    %cst_24 = arith.constant dense<0.000000e+00> : vector<16xf32>
    %57 = vector.multi_reduction <add>, %56, %cst_24 [1] : vector<16x16xf32> to vector<16xf32>
    %58 = vector.shape_cast %57 : vector<16xf32> to vector<16x1xf32>
    %59 = vector.broadcast %58 : vector<16x1xf32> to vector<16x16xf32>
    %60 = arith.divf %56, %59 : vector<16x16xf32>
    %cst_25 = arith.constant dense<0.000000e+00> : vector<16x16xf32>
    %61 = tpu.matmul %60, %48, %cst_25 {dimension_numbers = #tpu.dot_dimension_numbers<[1], [0], [0], [1], [0, 0, 1, 1], [], []>} : vector<16x16xf32>, vector<16x16xf32>, vector<16x16xf32> -> vector<16x16xf32>
    %c16 = arith.constant 16 : index
    %c0_26 = arith.constant 0 : index
    %62 = vector.load %arg5[%c16, %c0_26] : memref<64x64xf32, #tpu.memory_space<vmem>>, vector<16x64xf32>
    %cst_27 = arith.constant dense<0.000000e+00> : vector<16x64xf32>
    %63 = tpu.matmul %61, %62, %cst_27 {dimension_numbers = #tpu.dot_dimension_numbers<[1], [0], [0], [1], [0, 0, 1, 1], [], []>} : vector<16x16xf32>, vector<16x64xf32>, vector<16x64xf32> -> vector<16x64xf32>
    %64 = arith.addf %45, %63 : vector<16x64xf32>
    %65 = vector.extract_strided_slice %27 {offsets = [0, 32], sizes = [16, 16], strides = [1, 1]} : vector<16x192xf32> to vector<16x16xf32>
    %66 = vector.extract_strided_slice %27 {offsets = [0, 96], sizes = [16, 16], strides = [1, 1]} : vector<16x192xf32> to vector<16x16xf32>
    %67 = vector.extract_strided_slice %27 {offsets = [0, 160], sizes = [16, 16], strides = [1, 1]} : vector<16x192xf32> to vector<16x16xf32>
    %cst_28 = arith.constant dense<0.000000e+00> : vector<16x16xf32>
    %68 = tpu.matmul %65, %66, %cst_28 {dimension_numbers = #tpu.dot_dimension_numbers<[1], [1], [0], [0], [0, 0, 1, 0], [], []>} : vector<16x16xf32>, vector<16x16xf32>, vector<16x16xf32> -> vector<16x16xf32>
    %cst_29 = arith.constant 0.288675129 : f32
    %69 = vector.broadcast %cst_29 : f32 to vector<16x16xf32>
    %70 = arith.mulf %68, %69 : vector<16x16xf32>
    %cst_30 = arith.constant dense<0xFF800000> : vector<16xf32>
    %71 = vector.multi_reduction <maximumf>, %70, %cst_30 [1] : vector<16x16xf32> to vector<16xf32>
    %72 = vector.shape_cast %71 : vector<16xf32> to vector<16x1xf32>
    %73 = vector.broadcast %72 : vector<16x1xf32> to vector<16x16xf32>
    %74 = arith.subf %70, %73 : vector<16x16xf32>
    %75 = math.exp %74 : vector<16x16xf32>
    %cst_31 = arith.constant dense<0.000000e+00> : vector<16xf32>
    %76 = vector.multi_reduction <add>, %75, %cst_31 [1] : vector<16x16xf32> to vector<16xf32>
    %77 = vector.shape_cast %76 : vector<16xf32> to vector<16x1xf32>
    %78 = vector.broadcast %77 : vector<16x1xf32> to vector<16x16xf32>
    %79 = arith.divf %75, %78 : vector<16x16xf32>
    %cst_32 = arith.constant dense<0.000000e+00> : vector<16x16xf32>
    %80 = tpu.matmul %79, %67, %cst_32 {dimension_numbers = #tpu.dot_dimension_numbers<[1], [0], [0], [1], [0, 0, 1, 1], [], []>} : vector<16x16xf32>, vector<16x16xf32>, vector<16x16xf32> -> vector<16x16xf32>
    %c32 = arith.constant 32 : index
    %c0_33 = arith.constant 0 : index
    %81 = vector.load %arg5[%c32, %c0_33] : memref<64x64xf32, #tpu.memory_space<vmem>>, vector<16x64xf32>
    %cst_34 = arith.constant dense<0.000000e+00> : vector<16x64xf32>
    %82 = tpu.matmul %80, %81, %cst_34 {dimension_numbers = #tpu.dot_dimension_numbers<[1], [0], [0], [1], [0, 0, 1, 1], [], []>} : vector<16x16xf32>, vector<16x64xf32>, vector<16x64xf32> -> vector<16x64xf32>
    %83 = arith.addf %64, %82 : vector<16x64xf32>
    %84 = vector.extract_strided_slice %27 {offsets = [0, 48], sizes = [16, 16], strides = [1, 1]} : vector<16x192xf32> to vector<16x16xf32>
    %85 = vector.extract_strided_slice %27 {offsets = [0, 112], sizes = [16, 16], strides = [1, 1]} : vector<16x192xf32> to vector<16x16xf32>
    %86 = vector.extract_strided_slice %27 {offsets = [0, 176], sizes = [16, 16], strides = [1, 1]} : vector<16x192xf32> to vector<16x16xf32>
    %cst_35 = arith.constant dense<0.000000e+00> : vector<16x16xf32>
    %87 = tpu.matmul %84, %85, %cst_35 {dimension_numbers = #tpu.dot_dimension_numbers<[1], [1], [0], [0], [0, 0, 1, 0], [], []>} : vector<16x16xf32>, vector<16x16xf32>, vector<16x16xf32> -> vector<16x16xf32>
    %cst_36 = arith.constant 0.288675129 : f32
    %88 = vector.broadcast %cst_36 : f32 to vector<16x16xf32>
    %89 = arith.mulf %87, %88 : vector<16x16xf32>
    %cst_37 = arith.constant dense<0xFF800000> : vector<16xf32>
    %90 = vector.multi_reduction <maximumf>, %89, %cst_37 [1] : vector<16x16xf32> to vector<16xf32>
    %91 = vector.shape_cast %90 : vector<16xf32> to vector<16x1xf32>
    %92 = vector.broadcast %91 : vector<16x1xf32> to vector<16x16xf32>
    %93 = arith.subf %89, %92 : vector<16x16xf32>
    %94 = math.exp %93 : vector<16x16xf32>
    %cst_38 = arith.constant dense<0.000000e+00> : vector<16xf32>
    %95 = vector.multi_reduction <add>, %94, %cst_38 [1] : vector<16x16xf32> to vector<16xf32>
    %96 = vector.shape_cast %95 : vector<16xf32> to vector<16x1xf32>
    %97 = vector.broadcast %96 : vector<16x1xf32> to vector<16x16xf32>
    %98 = arith.divf %94, %97 : vector<16x16xf32>
    %cst_39 = arith.constant dense<0.000000e+00> : vector<16x16xf32>
    %99 = tpu.matmul %98, %86, %cst_39 {dimension_numbers = #tpu.dot_dimension_numbers<[1], [0], [0], [1], [0, 0, 1, 1], [], []>} : vector<16x16xf32>, vector<16x16xf32>, vector<16x16xf32> -> vector<16x16xf32>
    %c48 = arith.constant 48 : index
    %c0_40 = arith.constant 0 : index
    %100 = vector.load %arg5[%c48, %c0_40] : memref<64x64xf32, #tpu.memory_space<vmem>>, vector<16x64xf32>
    %cst_41 = arith.constant dense<0.000000e+00> : vector<16x64xf32>
    %101 = tpu.matmul %99, %100, %cst_41 {dimension_numbers = #tpu.dot_dimension_numbers<[1], [0], [0], [1], [0, 0, 1, 1], [], []>} : vector<16x16xf32>, vector<16x64xf32>, vector<16x64xf32> -> vector<16x64xf32>
    %102 = arith.addf %83, %101 : vector<16x64xf32>
    %c0_42 = arith.constant 0 : index
    %c0_43 = arith.constant 0 : index
    %103 = vector.load %arg6[%c0_42, %c0_43] : memref<1x64xf32, #tpu.memory_space<vmem>>, vector<1x64xf32>
    %104 = vector.broadcast %103 : vector<1x64xf32> to vector<16x64xf32>
    %105 = arith.addf %102, %104 : vector<16x64xf32>
    %c0_44 = arith.constant 0 : index
    %c0_45 = arith.constant 0 : index
    %c0_46 = arith.constant 0 : index
    %106 = vector.load %arg7[%c0_44, %c0_45, %c0_46] : memref<1x16x64xf32, #tpu.memory_space<vmem>>, vector<1x16x64xf32>
    %107 = vector.shape_cast %106 : vector<1x16x64xf32> to vector<16x64xf32>
    %108 = vector.shape_cast %105 : vector<16x64xf32> to vector<1x16x64xf32>
    tpu.vector_store %arg7[%c0_44, %c0_45, %c0_46], %108 {strides = array<i32>} : memref<1x16x64xf32, #tpu.memory_space<vmem>>, vector<1x16x64xf32>,
    return
  }
  func.func @transform_0(%arg0: i32) -> (i32, i32, i32) {
    %c0_i32 = arith.constant 0 : i32
    %c0_i32_0 = arith.constant 0 : i32
    %c0_i32_1 = arith.constant 0 : i32
    return %arg0, %c0_i32, %c0_i32_0 : i32, i32, i32
  }
  func.func @transform_1(%arg0: i32) -> (i32, i32) {
    %c0_i32 = arith.constant 0 : i32
    %c0_i32_0 = arith.constant 0 : i32
    %c0_i32_1 = arith.constant 0 : i32
    return %c0_i32, %c0_i32_0 : i32, i32
  }
  func.func @transform_2(%arg0: i32) -> (i32, i32) {
    %c0_i32 = arith.constant 0 : i32
    %c0_i32_0 = arith.constant 0 : i32
    %c0_i32_1 = arith.constant 0 : i32
    return %c0_i32, %c0_i32_0 : i32, i32
  }
  func.func @transform_3(%arg0: i32) -> (i32, i32) {
    %c0_i32 = arith.constant 0 : i32
    %c0_i32_0 = arith.constant 0 : i32
    %c0_i32_1 = arith.constant 0 : i32
    return %c0_i32, %c0_i32_0 : i32, i32
  }
  func.func @transform_4(%arg0: i32) -> (i32, i32) {
    %c0_i32 = arith.constant 0 : i32
    %c0_i32_0 = arith.constant 0 : i32
    %c0_i32_1 = arith.constant 0 : i32
    return %c0_i32, %c0_i32_0 : i32, i32
  }
  func.func @transform_5(%arg0: i32) -> (i32, i32) {
    %c0_i32 = arith.constant 0 : i32
    %c0_i32_0 = arith.constant 0 : i32
    %c0_i32_1 = arith.constant 0 : i32
    return %c0_i32, %c0_i32_0 : i32, i32
  }
  func.func @transform_6(%arg0: i32) -> (i32, i32, i32) {
    %c0_i32 = arith.constant 0 : i32
    %c0_i32_0 = arith.constant 0 : i32
    %c0_i32_1 = arith.constant 0 : i32
    return %arg0, %c0_i32, %c0_i32_0 : i32, i32, i32
  }
}

</mosaic_0001>

<llo_original>
// kernel: tpu_custom_call.1
$region0: #{tpu_custom_call.1}
  #allocation0 [shape = 'u32[]', space=smem, size = 0x4, offset = 0x4, fixed_abs, tag = 'smem constant byte address 0x4 - core index']
  #allocation1 [shape = 'u32[72,128]{1,0:T(1,128)}', space=vmem, size = 0x9000, scoped, tag = 'internal scratch']
  %s0 = inlined_call_operand.hbm [shape: f32[2,16,48], index: 0, kind: input, shape index: {}]
  %s1 = inlined_call_operand.hbm [shape: f32[1,48], index: 1, kind: input, shape index: {}]
  %s2 = inlined_call_operand.vmem [shape: f32[1,48], index: 2, kind: input, shape index: {}]
  %s3 = inlined_call_operand.hbm [shape: f32[48,192], index: 3, kind: input, shape index: {}]
  %s4 = inlined_call_operand.hbm [shape: f32[64,64], index: 4, kind: input, shape index: {}]
  %s5 = inlined_call_operand.vmem [shape: f32[1,64], index: 5, kind: input, shape index: {}]
  %s6 = inlined_call_operand.hbm [shape: f32[2,16,64], index: 6, kind: output, shape index: {}]
  %s7 = sld [smem:[#allocation0]]
  $region73: #{tpu_custom_call.1} parent=0
    _
  %s9 = ssub.s32 1, %s7
  %s10 = scalar_select 0, %s9, %s7
  $region1: #{tpu_custom_call.1} parent=0
    #allocation2 [shape = 'u8[16384]{0}', space=vmem, size = 0x4000, scoped, tag = 'input window, operand 0']
    #allocation3 [shape = 's32[2]{0}', space=sflag, size = 0x8, scoped, tag = 'scoped memory for tpu_custom_call.1']
    #allocation4 [shape = 's32[2]{0}', space=sflag, size = 0x8, scoped, tag = 'scoped memory for tpu_custom_call.1']
    #allocation5 [shape = 'u8[512]{0}', space=vmem, size = 0x400, scoped, tag = 'input window, operand 1, single buffered']
    #allocation6 [shape = 's32[1]{0}', space=sflag, size = 0x4, scoped, tag = 'scoped memory for tpu_custom_call.1']
    #allocation7 [shape = 'u8[49152]{0}', space=vmem, size = 0xc000, scoped, tag = 'input window, operand 3, single buffered']
    #allocation8 [shape = 'u8[32768]{0}', space=vmem, size = 0x8000, scoped, tag = 'input window, operand 4, single buffered']
    #allocation9 [shape = 's32[1]{0}', space=sflag, size = 0x4, scoped, tag = 'scoped memory for tpu_custom_call.1']
    #allocation10 [shape = 'u8[16384]{0}', space=vmem, size = 0x4000, scoped, tag = 'output window, operand 0']
    %11 = vsyncpa [#allocation3], 0
    %s12 = scalar_lea.sflag [#allocation3], 1
    %13 = vsyncpa %s12, 0
    %14 = vsyncpa [#allocation6], 0
    %15 = vsyncpa [#allocation9], 0
    %16 = vsyncpa [#allocation4], 0
    %s17 = scalar_lea.sflag [#allocation4], 1
    %18 = vsyncpa %s17, 0
    loop: start=0, step=1, limit=4
    $region2: #{tpu_custom_call.1} parent=1 // loop_pre_header
      _
    $region3: #{tpu_custom_call.1} parent=1 // loop_header
      %s20 = sphi 0, %s24
      %p21 = scmp.ge.s32.totalorder %s20, 4
      %s30 = sphi 0, %s32
      %s33 = sphi 0, %s30
      %s34 = sphi 0, %s33
      %s50 = sphi 0, %s34
      %s54 = sphi 0, %s54
      %s56 = sphi 0, %s54
      %s57 = sphi 0, %s56
      %s71 = sphi 0, %s57
      %s75 = sphi 0, %s75
      %s77 = sphi 0, %s75
      %s78 = sphi 0, %s77
      %s92 = sphi 0, %s78
      %s96 = sphi 0, %s96
      %s98 = sphi 0, %s96
      %s99 = sphi 0, %s98
      %s113 = sphi 0, %s99
      %s117 = sphi 0, %s117
      %s119 = sphi 0, %s117
      %s120 = sphi 0, %s119
      %s134 = sphi 0, %s120
      %s138 = sphi 0, %s138
      %s140 = sphi 0, %s138
      %s141 = sphi 0, %s140
      %s155 = sphi 0, %s141
      %s161 = sphi 0, %s163
      %s164 = sphi 0, %s161
      %s165 = sphi 0, %s164
      %s181 = sphi 0, %s165
    $region4: #{tpu_custom_call.1} parent=1 // loop_header_branch
      %23 = sbr.rel (%p21) target = $region8
    $region5: #{tpu_custom_call.1} parent=1 // loop_body
      %s25 = ssub.s32 %s20, 1
      %s26 = ssub.s32 %s20, 2
      %s27 = sadd.s32 %s20, 1
      %s28 = ssub.s32 %s20, %s27
      %p29 = scmp.eq.s32.totalorder %s28, 0
      %s31 = sadd.s32 %s30, 1
      %s32 = scalar_select %p29, %s30, %s31
      %p35 = pneg %p29
      %p36 = scmp.eq.s32.totalorder %s20, 1
      %p37 = por %p35, %p36
      %p38 = scmp.ne.s32.totalorder %s30, %s33
      %p39 = scmp.eq.s32.totalorder %s20, 0
      %p40 = por %p38, %p39
      %p41 = scmp.ne.s32.totalorder %s30, %s33
      %p42 = scmp.eq.s32.totalorder %s25, 1
      %p43 = por %p41, %p42
      %p44 = scmp.ne.s32.totalorder %s33, %s34
      %p45 = scmp.eq.s32.totalorder %s25, 0
      %p46 = por %p44, %p45
      %p47 = scmp.ne.s32.totalorder %s33, %s34
      %p48 = scmp.eq.s32.totalorder %s26, 1
      %p49 = por %p47, %p48
      %p51 = scmp.ne.s32.totalorder %s34, %s50
      %p52 = scmp.eq.s32.totalorder %s26, 0
      %p53 = por %p51, %p52
      %s55 = sadd.s32 %s54, 1
      %p58 = scmp.eq.s32.totalorder %s20, 1
      %p59 = scmp.ne.s32.totalorder %s54, %s56
      %p60 = scmp.eq.s32.totalorder %s20, 0
      %p61 = por %p59, %p60
      %p62 = scmp.ne.s32.totalorder %s54, %s56
      %p63 = scmp.eq.s32.totalorder %s25, 1
      %p64 = por %p62, %p63
      %p65 = scmp.ne.s32.totalorder %s56, %s57
      %p66 = scmp.eq.s32.totalorder %s25, 0
      %p67 = por %p65, %p66
      %p68 = scmp.ne.s32.totalorder %s56, %s57
      %p69 = scmp.eq.s32.totalorder %s26, 1
      %p70 = por %p68, %p69
      %p72 = scmp.ne.s32.totalorder %s57, %s71
      %p73 = scmp.eq.s32.totalorder %s26, 0
      %p74 = por %p72, %p73
      %s76 = sadd.s32 %s75, 1
      %p79 = scmp.eq.s32.totalorder %s20, 1
      %p80 = scmp.ne.s32.totalorder %s75, %s77
      %p81 = scmp.eq.s32.totalorder %s20, 0
      %p82 = por %p80, %p81
      %p83 = scmp.ne.s32.totalorder %s75, %s77
      %p84 = scmp.eq.s32.totalorder %s25, 1
      %p85 = por %p83, %p84
      %p86 = scmp.ne.s32.totalorder %s77, %s78
      %p87 = scmp.eq.s32.totalorder %s25, 0
      %p88 = por %p86, %p87
      %p89 = scmp.ne.s32.totalorder %s77, %s78
      %p90 = scmp.eq.s32.totalorder %s26, 1
      %p91 = por %p89, %p90
      %p93 = scmp.ne.s32.totalorder %s78, %s92
      %p94 = scmp.eq.s32.totalorder %s26, 0
      %p95 = por %p93, %p94
      %s97 = sadd.s32 %s96, 1
      %p100 = scmp.eq.s32.totalorder %s20, 1
      %p101 = scmp.ne.s32.totalorder %s96, %s98
      %p102 = scmp.eq.s32.totalorder %s20, 0
      %p103 = por %p101, %p102
      %p104 = scmp.ne.s32.totalorder %s96, %s98
      %p105 = scmp.eq.s32.totalorder %s25, 1
      %p106 = por %p104, %p105
      %p107 = scmp.ne.s32.totalorder %s98, %s99
      %p108 = scmp.eq.s32.totalorder %s25, 0
      %p109 = por %p107, %p108
      %p110 = scmp.ne.s32.totalorder %s98, %s99
      %p111 = scmp.eq.s32.totalorder %s26, 1
      %p112 = por %p110, %p111
      %p114 = scmp.ne.s32.totalorder %s99, %s113
      %p115 = scmp.eq.s32.totalorder %s26, 0
      %p116 = por %p114, %p115
      %s118 = sadd.s32 %s117, 1
      %p121 = scmp.eq.s32.totalorder %s20, 1
      %p122 = scmp.ne.s32.totalorder %s117, %s119
      %p123 = scmp.eq.s32.totalorder %s20, 0
      %p124 = por %p122, %p123
      %p125 = scmp.ne.s32.totalorder %s117, %s119
      %p126 = scmp.eq.s32.totalorder %s25, 1
      %p127 = por %p125, %p126
      %p128 = scmp.ne.s32.totalorder %s119, %s120
      %p129 = scmp.eq.s32.totalorder %s25, 0
      %p130 = por %p128, %p129
      %p131 = scmp.ne.s32.totalorder %s119, %s120
      %p132 = scmp.eq.s32.totalorder %s26, 1
      %p133 = por %p131, %p132
      %p135 = scmp.ne.s32.totalorder %s120, %s134
      %p136 = scmp.eq.s32.totalorder %s26, 0
      %p137 = por %p135, %p136
      %s139 = sadd.s32 %s138, 1
      %p142 = scmp.eq.s32.totalorder %s20, 1
      %p143 = scmp.ne.s32.totalorder %s138, %s140
      %p144 = scmp.eq.s32.totalorder %s20, 0
      %p145 = por %p143, %p144
      %p146 = scmp.ne.s32.totalorder %s138, %s140
      %p147 = scmp.eq.s32.totalorder %s25, 1
      %p148 = por %p146, %p147
      %p149 = scmp.ne.s32.totalorder %s140, %s141
      %p150 = scmp.eq.s32.totalorder %s25, 0
      %p151 = por %p149, %p150
      %p152 = scmp.ne.s32.totalorder %s140, %s141
      %p153 = scmp.eq.s32.totalorder %s26, 1
      %p154 = por %p152, %p153
      %p156 = scmp.ne.s32.totalorder %s141, %s155
      %p157 = scmp.eq.s32.totalorder %s26, 0
      %p158 = por %p156, %p157
      %s159 = ssub.s32 %s20, %s27
      %p160 = scmp.eq.s32.totalorder %s159, 0
      %s162 = sadd.s32 %s161, 1
      %s163 = scalar_select %p160, %s161, %s162
      %p166 = pneg %p160
      %p167 = scmp.eq.s32.totalorder %s20, 1
      %p168 = por %p166, %p167
      %p169 = scmp.ne.s32.totalorder %s161, %s164
      %p170 = scmp.eq.s32.totalorder %s20, 0
      %p171 = por %p169, %p170
      %p172 = scmp.ne.s32.totalorder %s161, %s164
      %p173 = scmp.eq.s32.totalorder %s25, 1
      %p174 = por %p172, %p173
      %p175 = scmp.ne.s32.totalorder %s164, %s165
      %p176 = scmp.eq.s32.totalorder %s25, 0
      %p177 = por %p175, %p176
      %p178 = scmp.ne.s32.totalorder %s164, %s165
      %p179 = scmp.eq.s32.totalorder %s26, 1
      %p180 = por %p178, %p179
      %p182 = scmp.ne.s32.totalorder %s165, %s181
      %p183 = scmp.eq.s32.totalorder %s26, 0
      %p184 = por %p182, %p183
      %p185 = scmp.le.s32.totalorder 1, %s20
      %p186 = scmp.lt.s32.totalorder %s20, 3
      %p187 = pnand %p185, %p186
      %p188 = pneg %p187
      // Predicated region
      $region9: #{tpu_custom_call.1} parent=5 // pred_check
        _
      $region10: #{tpu_custom_call.1} parent=5 // pred_check_branch
        %190 = sbr.rel (%p187) target = $region12
      $region11: #{tpu_custom_call.1} parent=5 // pred_region
        %s191 = ssub.s32 %s20, 1
        // Predicated region
        $region13: #{tpu_custom_call.1} parent=11 // pred_check
          %p192 = pneg %p67
        $region14: #{tpu_custom_call.1} parent=11 // pred_check_branch
          %194 = sbr.rel (%p192) target = $region16
        $region15: #{tpu_custom_call.1} parent=11 // pred_region
          %196 = vsyncadd [#allocation6], 0
          %s198 = sshll.u32 %s1, 4
          %s199 = int_to_ptr.hbm [resolvable:$true] %s198
          %s200 = sshll.u32 [#allocation5], 4
          %s201 = int_to_ptr.vmem [resolvable:$true] %s200
          %203 = dma.hbm_to_vmem [thread:$0]  %s199, 16, %s201, [#allocation6]
        $region16: #{tpu_custom_call.1} parent=11 // pred_fallthru
          _
        // Predicated region
        $region17: #{tpu_custom_call.1} parent=11 // pred_check
          %p204 = pneg %p88
        $region18: #{tpu_custom_call.1} parent=11 // pred_check_branch
          %206 = sbr.rel (%p204) target = $region20
        $region19: #{tpu_custom_call.1} parent=11 // pred_region
          _
        $region20: #{tpu_custom_call.1} parent=11 // pred_fallthru
          _
        // Predicated region
        $region21: #{tpu_custom_call.1} parent=11 // pred_check
          %p207 = pneg %p109
        $region22: #{tpu_custom_call.1} parent=11 // pred_check_branch
          %209 = sbr.rel (%p207) target = $region24
        $region23: #{tpu_custom_call.1} parent=11 // pred_region
          %211 = vsyncadd [#allocation6], 0
          %s212 = sshll.u32 %s3, 4
          %s213 = int_to_ptr.hbm [resolvable:$true] %s212
          %s214 = sshll.u32 [#allocation7], 4
          %s215 = int_to_ptr.vmem [resolvable:$true] %s214
          %220 = dma.hbm_to_vmem [thread:$0]  %s213, 1536, %s215, [#allocation6], 256, 256, 16
        $region24: #{tpu_custom_call.1} parent=11 // pred_fallthru
          _
        // Predicated region
        $region25: #{tpu_custom_call.1} parent=11 // pred_check
          %p221 = pneg %p130
        $region26: #{tpu_custom_call.1} parent=11 // pred_check_branch
          %223 = sbr.rel (%p221) target = $region28
        $region27: #{tpu_custom_call.1} parent=11 // pred_region
          %225 = vsyncadd [#allocation9], 0
          %s226 = sshll.u32 %s4, 4
          %s227 = int_to_ptr.hbm [resolvable:$true] %s226
          %s228 = sshll.u32 [#allocation8], 4
          %s229 = int_to_ptr.vmem [resolvable:$true] %s228
          %234 = dma.hbm_to_vmem [thread:$0]  %s227, 1024, %s229, [#allocation9], 128, 128, 8
        $region28: #{tpu_custom_call.1} parent=11 // pred_fallthru
          _
        // Predicated region
        $region29: #{tpu_custom_call.1} parent=11 // pred_check
          %p235 = pneg %p151
        $region30: #{tpu_custom_call.1} parent=11 // pred_check_branch
          %237 = sbr.rel (%p235) target = $region32
        $region31: #{tpu_custom_call.1} parent=11 // pred_region
          _
        $region32: #{tpu_custom_call.1} parent=11 // pred_fallthru
          _
      $region12: #{tpu_custom_call.1} parent=5 // pred_fallthru
        _
      %p238 = scmp.lt.s32.totalorder %s20, 2
      // Predicated region
      $region33: #{tpu_custom_call.1} parent=5 // pred_check
        %p239 = pneg %p238
      $region34: #{tpu_custom_call.1} parent=5 // pred_check_branch
        %241 = sbr.rel (%p239) target = $region36
      $region35: #{tpu_custom_call.1} parent=5 // pred_region
        // Predicated region
        $region37: #{tpu_custom_call.1} parent=35 // pred_check
          %p242 = pneg %p40
        $region38: #{tpu_custom_call.1} parent=35 // pred_check_branch
          %244 = sbr.rel (%p242) target = $region40
        $region39: #{tpu_custom_call.1} parent=35 // pred_region
          %s245 = sand.u32 %s30, 1
          %s246 = scalar_lea.sflag [#allocation3], %s245
          %s247 = sand.u32 %s30, 1
          %s248 = smul.addr %s247, 16
          %s249 = scalar_lea.vmem [#allocation2], %s248
          %251 = vsyncadd %s246, 0
          %s252 = smul.addr %s20, 2
          %s253 = smul.addr %s252, 8
          %s254 = scalar_lea.hbm %s0, %s253
          %s255 = sshll.u32 %s254, 4
          %s256 = int_to_ptr.hbm [resolvable:$true] %s255
          %s257 = sshll.u32 %s249, 4
          %s258 = int_to_ptr.vmem [resolvable:$true] %s257
          %263 = dma.hbm_to_vmem [thread:$0]  %s256, 256, %s258, %s246, 128, 128, 8
        $region40: #{tpu_custom_call.1} parent=35 // pred_fallthru
          _
      $region36: #{tpu_custom_call.1} parent=5 // pred_fallthru
        _
      %p264 = scmp.le.s32.totalorder 1, %s20
      %p265 = scmp.lt.s32.totalorder %s20, 3
      %p266 = pnand %p264, %p265
      %p267 = pneg %p266
      // Predicated region
      $region41: #{tpu_custom_call.1} parent=5 // pred_check
        _
      $region42: #{tpu_custom_call.1} parent=5 // pred_check_branch
        %269 = sbr.rel (%p266) target = $region44
      $region43: #{tpu_custom_call.1} parent=5 // pred_region
        %s270 = ssub.s32 %s20, 1
        %s271 = sand.u32 %s33, 1
        %s272 = scalar_lea.sflag [#allocation3], %s271
        %s273 = sand.u32 %s33, 1
        %s274 = smul.addr %s273, 16
        %s275 = scalar_lea.vmem [#allocation2], %s274
        // Predicated region
        $region45: #{tpu_custom_call.1} parent=43 // pred_check
          %p276 = pneg %p46
        $region46: #{tpu_custom_call.1} parent=43 // pred_check_branch
          %278 = sbr.rel (%p276) target = $region48
        $region47: #{tpu_custom_call.1} parent=43 // pred_region
          %280 = dma.done %s272, 256
        $region48: #{tpu_custom_call.1} parent=43 // pred_fallthru
          _
        // Predicated region
        $region49: #{tpu_custom_call.1} parent=43 // pred_check
          %p281 = pneg %p67
        $region50: #{tpu_custom_call.1} parent=43 // pred_check_branch
          %283 = sbr.rel (%p281) target = $region52
        $region51: #{tpu_custom_call.1} parent=43 // pred_region
          %285 = dma.done [#allocation6], 16
        $region52: #{tpu_custom_call.1} parent=43 // pred_fallthru
          _
        // Predicated region
        $region53: #{tpu_custom_call.1} parent=43 // pred_check
          %p286 = pneg %p109
        $region54: #{tpu_custom_call.1} parent=43 // pred_check_branch
          %288 = sbr.rel (%p286) target = $region56
        $region55: #{tpu_custom_call.1} parent=43 // pred_region
          %290 = dma.done [#allocation6], 1536
        $region56: #{tpu_custom_call.1} parent=43 // pred_fallthru
          _
        // Predicated region
        $region57: #{tpu_custom_call.1} parent=43 // pred_check
          %p291 = pneg %p130
        $region58: #{tpu_custom_call.1} parent=43 // pred_check_branch
          %293 = sbr.rel (%p291) target = $region60
        $region59: #{tpu_custom_call.1} parent=43 // pred_region
          %295 = dma.done [#allocation9], 1024
        $region60: #{tpu_custom_call.1} parent=43 // pred_fallthru
          _
        %s296 = sand.u32 %s33, 1
        %s297 = scalar_lea.sflag [#allocation3], %s296
        %s298 = sand.u32 %s33, 1
        %s299 = smul.addr %s298, 16
        %s300 = scalar_lea.vmem [#allocation2], %s299
        %p301 = pneg %p46
        %p302 = pneg %p43
        %p303 = pneg %p67
        %p304 = pneg %p64
        %p305 = pneg %p88
        %p306 = pneg %p85
        %p307 = pneg %p109
        %p308 = pneg %p106
        %p309 = pneg %p130
        %p310 = pneg %p127
        %p311 = pneg %p151
        %p312 = pneg %p148
        %p313 = pneg %p177
        %p314 = pneg %p174
        %s315 = sand.u32 %s164, 1
        %s316 = scalar_lea.sflag [#allocation4], %s315
        %s317 = sand.u32 %s164, 1
        %s318 = smul.addr %s317, 16
        %s319 = scalar_lea.vmem [#allocation10], %s318
        %v320 = vld [vmem:[%s275] sm:$0xff]
        %v321 = vld [vmem:[%s275 + $0x8] sm:$0xff]
        %vm322 = vcmask 392192
        %v323 = vsel %vm322, %v320, 0.0
        %324 = vadd.xlane.f32.xlu0 %v323
        %v325 = vpop.xlane.xlu0 %324
        %v326 = vsel %vm322, %v321, 0.0
        %327 = vadd.xlane.f32.xlu0 %v326
        %v328 = vpop.xlane.xlu0 %327
        %v329 = vrcp.pop 48.0
        %v330 = vmul.f32 48.0, %v329
        %v331 = vsub.f32 1.0, %v330
        %v332 = vmul.f32 %v329, %v331
        %v333 = vadd.f32 %v329, %v332
        %vm334 = vweird.f32 %v329
        %v335 = vsel %vm334, %v329, %v333
        %v336 = vmul.f32 %v325, %v335
        %v337 = vmul.f32 %v328, %v335
        %v338 = vmul.f32 %v320, %v320
        %v339 = vmul.f32 %v321, %v321
        %v340 = vsel %vm322, %v338, 0.0
        %341 = vadd.xlane.f32.xlu0 %v340
        %v342 = vpop.xlane.xlu0 %341
        %v343 = vsel %vm322, %v339, 0.0
        %344 = vadd.xlane.f32.xlu0 %v343
        %v345 = vpop.xlane.xlu0 %344
        %v346 = vmul.f32 %v342, %v335
        %v347 = vmul.f32 %v345, %v335
        %v348 = vmul.f32 %v336, %v336
        %v349 = vmul.f32 %v337, %v337
        %v350 = vsub.f32 %v346, %v348
        %v351 = vsub.f32 %v347, %v349
        %v352 = vsub.f32 %v320, %v336
        %v353 = vsub.f32 %v321, %v337
        %v354 = vadd.f32 %v350, 1e-05
        %v355 = vadd.f32 %v351, 1e-05
        %v356 = vrsqrt.pop %v354
        %v357 = vmul.f32 %v356, %v354
        %v358 = vmul.f32 %v357, %v356
        %v359 = vmul.f32 0.5, %v358
        %v360 = vsub.f32 1.5, %v359
        %v361 = vmul.f32 %v356, %v360
        %vm362 = vweird.f32 %v354
        %vm363 = vweird.f32 %v356
        %vm364 = vmor %vm362, %vm363
        %v365 = vsel %vm364, %v356, %v361
        %v366 = vrsqrt.pop %v355
        %v367 = vmul.f32 %v366, %v355
        %v368 = vmul.f32 %v367, %v366
        %v369 = vmul.f32 0.5, %v368
        %v370 = vsub.f32 1.5, %v369
        %v371 = vmul.f32 %v366, %v370
        %vm372 = vweird.f32 %v355
        %vm373 = vweird.f32 %v366
        %vm374 = vmor %vm372, %vm373
        %v375 = vsel %vm374, %v366, %v371
        %v376 = vmul.f32 %v352, %v365
        %v377 = vmul.f32 %v353, %v375
        %v378 = vld [vmem:[#allocation5] sm:$0x1]
        %v380 = vperm.slane %v378, 0
        %v382 = vmul.f32 %v376, %v380
        %v383 = vmul.f32 %v377, %v380
        %v384 = vld [vmem:[%s2] sm:$0x1]
        %v386 = vperm.slane %v384, 0
        %v388 = vadd.f32 %v382, %v386
        %v389 = vadd.f32 %v383, %v386
        %v390 = vld [vmem:[#allocation7] sm:$0xff]
        %v391 = vld [vmem:[#allocation7 + $0x8] sm:$0xff]
        %v392 = vld [vmem:[#allocation7 + $0x10] sm:$0xff]
        %v393 = vld [vmem:[#allocation7 + $0x18] sm:$0xff]
        %v394 = vld [vmem:[#allocation7 + $0x20] sm:$0xff]
        %v395 = vld [vmem:[#allocation7 + $0x28] sm:$0xff]
        %v396 = vld [vmem:[#allocation7 + $0x30] sm:$0xff]
        %v397 = vld [vmem:[#allocation7 + $0x38] sm:$0xff]
        %v398 = vld [vmem:[#allocation7 + $0x40] sm:$0xff]
        %v399 = vld [vmem:[#allocation7 + $0x48] sm:$0xff]
        %v400 = vld [vmem:[#allocation7 + $0x50] sm:$0xff]
        %v401 = vld [vmem:[#allocation7 + $0x58] sm:$0xff]
        %v403 = vsel %vm322, %v388, 0
        %v406 = vsel %vm322, %v389, 0
        %408 = vmatpush.msra.mxu0 0.0
        %409 = vmatpush.msra.mxu0 0.0
        %410 = vmatpush.msra.mxu0 0.0
        %411 = vmatpush.msra.mxu0 0.0
        %412 = vmatpush.msra.mxu0 0.0
        %413 = vmatpush.msra.mxu0 0.0
        %414 = vmatpush.msra.mxu0 0.0
        %415 = vmatpush.msra.mxu0 0.0
        %416 = vmatpush.msra.mxu0 0.0
        %417 = vmatpush.msra.mxu0 0.0
        %418 = vmatpush.msra.mxu0 %v400
        %419 = vmatpush.msra.mxu0 %v398
        %420 = vmatpush.msra.mxu0 %v396
        %421 = vmatpush.msra.mxu0 %v394
        %422 = vmatpush.msra.mxu0 %v392
        %423 = vmatpush.msra.mxu0 %v390
        %424 = vmatmul.f32.gmra.mxu0 %v403
        %v425 = vpop.f32.mrf.mxu0
        %v426 = vadd.f32 0.0, %v425
        %427 = vmatmul.f32.gmra.mxu0 %v406
        %v428 = vpop.f32.mrf.mxu0
        %v429 = vadd.f32 0.0, %v428
        %430 = vdwg.mxu0
        %431 = vmatpush.msra.mxu0 0.0
        %432 = vmatpush.msra.mxu0 0.0
        %433 = vmatpush.msra.mxu0 0.0
        %434 = vmatpush.msra.mxu0 0.0
        %435 = vmatpush.msra.mxu0 0.0
        %436 = vmatpush.msra.mxu0 0.0
        %437 = vmatpush.msra.mxu0 0.0
        %438 = vmatpush.msra.mxu0 0.0
        %439 = vmatpush.msra.mxu0 0.0
        %440 = vmatpush.msra.mxu0 0.0
        %441 = vmatpush.msra.mxu0 %v401
        %442 = vmatpush.msra.mxu0 %v399
        %443 = vmatpush.msra.mxu0 %v397
        %444 = vmatpush.msra.mxu0 %v395
        %445 = vmatpush.msra.mxu0 %v393
        %446 = vmatpush.msra.mxu0 %v391
        %447 = vmatmul.f32.gmra.mxu0 %v403
        %v448 = vpop.f32.mrf.mxu0
        %v449 = vadd.f32 0.0, %v448
        %450 = vmatmul.f32.gmra.mxu0 %v406
        %v451 = vpop.f32.mrf.mxu0
        %v452 = vadd.f32 0.0, %v451
        %453 = vdwg.mxu0
        %456 = vrot.lane.b32.xlu0 %v426, 64
        %v457 = vpop.permute.xlu0 %456
        %458 = vrot.lane.b32.xlu0 %v429, 64
        %v459 = vpop.permute.xlu0 %458
        %vm460 = vcmask 130048
        %v461 = vsel %vm460, %v426, 0
        %v463 = vsel %vm460, %v429, 0
        %v465 = vsel %vm460, %v457, 0
        %v467 = vsel %vm460, %v459, 0
        %469 = vmatpush.xpose.msra.mxu0 0.0
        %470 = vmatpush.xpose.msra.mxu0 0.0
        %471 = vmatpush.xpose.msra.mxu0 0.0
        %472 = vmatpush.xpose.msra.mxu0 0.0
        %473 = vmatpush.xpose.msra.mxu0 0.0
        %474 = vmatpush.xpose.msra.mxu0 0.0
        %475 = vmatpush.xpose.msra.mxu0 0.0
        %476 = vmatpush.xpose.msra.mxu0 0.0
        %477 = vmatpush.xpose.msra.mxu0 0.0
        %478 = vmatpush.xpose.msra.mxu0 0.0
        %479 = vmatpush.xpose.msra.mxu0 0.0
        %480 = vmatpush.xpose.msra.mxu0 0.0
        %481 = vmatpush.xpose.msra.mxu0 0.0
        %482 = vmatpush.xpose.msra.mxu0 0.0
        %483 = vmatpush.xpose.msra.mxu0 %v467
        %484 = vmatpush.xpose.msra.mxu0 %v465
        %485 = vmatmul.f32.gmra.mxu0 %v461
        %v486 = vpop.f32.mrf.mxu0
        %v487 = vadd.f32 0.0, %v486
        %488 = vmatmul.f32.gmra.mxu0 %v463
        %v489 = vpop.f32.mrf.mxu0
        %v490 = vadd.f32 0.0, %v489
        %491 = vdwg.mxu0
        %v492 = vmul.f32 %v487, 0.28867513
        %v493 = vmul.f32 %v490, 0.28867513
        %v494 = vsel %vm460, %v492, -inf
        %495 = vmax.xlane.f32.xlu0 %v494
        %v496 = vpop.xlane.xlu0 %495
        %v497 = vsel %vm460, %v493, -inf
        %498 = vmax.xlane.f32.xlu0 %v497
        %v499 = vpop.xlane.xlu0 %498
        %v500 = vsub.f32 %v492, %v496
        %v501 = vsub.f32 %v493, %v499
        %v502 = vmul.f32 %v500, 1.442695
        %v503 = vpow.pop %v502
        %v504 = vmul.f32 %v501, 1.442695
        %v505 = vpow.pop %v504
        %v506 = vsel %vm460, %v503, 0.0
        %507 = vadd.xlane.f32.xlu0 %v506
        %v508 = vpop.xlane.xlu0 %507
        %v509 = vsel %vm460, %v505, 0.0
        %510 = vadd.xlane.f32.xlu0 %v509
        %v511 = vpop.xlane.xlu0 %510
        %v512 = vrcp.pop %v508
        %v513 = vmul.f32 %v508, %v512
        %v514 = vsub.f32 1.0, %v513
        %v515 = vmul.f32 %v512, %v514
        %v516 = vadd.f32 %v512, %v515
        %vm517 = vweird.f32 %v508
        %vm518 = vweird.f32 %v512
        %vm519 = vmor %vm517, %vm518
        %v520 = vsel %vm519, %v512, %v516
        %v521 = vand.u32 2147483647, %v508
        %vm522 = vcmp.eq.f32.partialorder %v521, 8.507059e+37
        %v523 = vand.u32 %v508, 2147483648
        %v524 = vor.u32 1.1754944e-38, %v523
        %v525 = vsel %vm522, %v524, %v520
        %v526 = vmul.f32 %v503, %v525
        %v527 = vrcp.pop %v511
        %v528 = vmul.f32 %v511, %v527
        %v529 = vsub.f32 1.0, %v528
        %v530 = vmul.f32 %v527, %v529
        %v531 = vadd.f32 %v527, %v530
        %vm532 = vweird.f32 %v511
        %vm533 = vweird.f32 %v527
        %vm534 = vmor %vm532, %vm533
        %v535 = vsel %vm534, %v527, %v531
        %v536 = vand.u32 2147483647, %v511
        %vm537 = vcmp.eq.f32.partialorder %v536, 8.507059e+37
        %v538 = vand.u32 %v511, 2147483648
        %v539 = vor.u32 1.1754944e-38, %v538
        %v540 = vsel %vm537, %v539, %v535
        %v541 = vmul.f32 %v505, %v540
        %v543 = vsel %vm460, %v526, 0
        %v546 = vsel %vm460, %v541, 0
        %548 = vmatpush.msra.mxu0 0.0
        %549 = vmatpush.msra.mxu0 0.0
        %550 = vmatpush.msra.mxu0 0.0
        %551 = vmatpush.msra.mxu0 0.0
        %552 = vmatpush.msra.mxu0 0.0
        %553 = vmatpush.msra.mxu0 0.0
        %554 = vmatpush.msra.mxu0 0.0
        %555 = vmatpush.msra.mxu0 0.0
        %556 = vmatpush.msra.mxu0 0.0
        %557 = vmatpush.msra.mxu0 0.0
        %558 = vmatpush.msra.mxu0 0.0
        %559 = vmatpush.msra.mxu0 0.0
        %560 = vmatpush.msra.mxu0 0.0
        %561 = vmatpush.msra.mxu0 0.0
        %562 = vmatpush.msra.mxu0 %v452
        %563 = vmatpush.msra.mxu0 %v449
        %564 = vmatmul.f32.gmra.mxu0 %v543
        %v565 = vpop.f32.mrf.mxu0
        %v566 = vadd.f32 0.0, %v565
        %567 = vmatmul.f32.gmra.mxu0 %v546
        %v568 = vpop.f32.mrf.mxu0
        %v569 = vadd.f32 0.0, %v568
        %570 = vdwg.mxu0
        %v571 = vld [vmem:[#allocation8] sm:$0xff]
        %v572 = vld [vmem:[#allocation8 + $0x8] sm:$0xff]
        %573 = vrot.lane.b32.xlu0 %v426, 112
        %v574 = vpop.permute.xlu0 %573
        %575 = vrot.lane.b32.xlu0 %v429, 112
        %v576 = vpop.permute.xlu0 %575
        %577 = vrot.lane.b32.xlu0 %v426, 48
        %v578 = vpop.permute.xlu0 %577
        %579 = vrot.lane.b32.xlu0 %v429, 48
        %v580 = vpop.permute.xlu0 %579
        %v581 = vsel %vm460, %v574, 0
        %v583 = vsel %vm460, %v576, 0
        %v585 = vsel %vm460, %v578, 0
        %v587 = vsel %vm460, %v580, 0
        %589 = vmatpush.xpose.msra.mxu0 0.0
        %590 = vmatpush.xpose.msra.mxu0 0.0
        %591 = vmatpush.xpose.msra.mxu0 0.0
        %592 = vmatpush.xpose.msra.mxu0 0.0
        %593 = vmatpush.xpose.msra.mxu0 0.0
        %594 = vmatpush.xpose.msra.mxu0 0.0
        %595 = vmatpush.xpose.msra.mxu0 0.0
        %596 = vmatpush.xpose.msra.mxu0 0.0
        %597 = vmatpush.xpose.msra.mxu0 0.0
        %598 = vmatpush.xpose.msra.mxu0 0.0
        %599 = vmatpush.xpose.msra.mxu0 0.0
        %600 = vmatpush.xpose.msra.mxu0 0.0
        %601 = vmatpush.xpose.msra.mxu0 0.0
        %602 = vmatpush.xpose.msra.mxu0 0.0
        %603 = vmatpush.xpose.msra.mxu0 %v587
        %604 = vmatpush.xpose.msra.mxu0 %v585
        %605 = vmatmul.f32.gmra.mxu0 %v581
        %v606 = vpop.f32.mrf.mxu0
        %v607 = vadd.f32 0.0, %v606
        %608 = vmatmul.f32.gmra.mxu0 %v583
        %v609 = vpop.f32.mrf.mxu0
        %v610 = vadd.f32 0.0, %v609
        %611 = vdwg.mxu0
        %v612 = vmul.f32 %v607, 0.28867513
        %v613 = vmul.f32 %v610, 0.28867513
        %v614 = vsel %vm460, %v612, -inf
        %615 = vmax.xlane.f32.xlu0 %v614
        %v616 = vpop.xlane.xlu0 %615
        %v617 = vsel %vm460, %v613, -inf
        %618 = vmax.xlane.f32.xlu0 %v617
        %v619 = vpop.xlane.xlu0 %618
        %v620 = vsub.f32 %v612, %v616
        %v621 = vsub.f32 %v613, %v619
        %v622 = vmul.f32 %v620, 1.442695
        %v623 = vpow.pop %v622
        %v624 = vmul.f32 %v621, 1.442695
        %v625 = vpow.pop %v624
        %v626 = vsel %vm460, %v623, 0.0
        %627 = vadd.xlane.f32.xlu0 %v626
        %v628 = vpop.xlane.xlu0 %627
        %v629 = vsel %vm460, %v625, 0.0
        %630 = vadd.xlane.f32.xlu0 %v629
        %v631 = vpop.xlane.xlu0 %630
        %v632 = vrcp.pop %v628
        %v633 = vmul.f32 %v628, %v632
        %v634 = vsub.f32 1.0, %v633
        %v635 = vmul.f32 %v632, %v634
        %v636 = vadd.f32 %v632, %v635
        %vm637 = vweird.f32 %v628
        %vm638 = vweird.f32 %v632
        %vm639 = vmor %vm637, %vm638
        %v640 = vsel %vm639, %v632, %v636
        %v641 = vand.u32 2147483647, %v628
        %vm642 = vcmp.eq.f32.partialorder %v641, 8.507059e+37
        %v643 = vand.u32 %v628, 2147483648
        %v644 = vor.u32 1.1754944e-38, %v643
        %v645 = vsel %vm642, %v644, %v640
        %v646 = vmul.f32 %v623, %v645
        %v647 = vrcp.pop %v631
        %v648 = vmul.f32 %v631, %v647
        %v649 = vsub.f32 1.0, %v648
        %v650 = vmul.f32 %v647, %v649
        %v651 = vadd.f32 %v647, %v650
        %vm652 = vweird.f32 %v631
        %vm653 = vweird.f32 %v647
        %vm654 = vmor %vm652, %vm653
        %v655 = vsel %vm654, %v647, %v651
        %v656 = vand.u32 2147483647, %v631
        %vm657 = vcmp.eq.f32.partialorder %v656, 8.507059e+37
        %v658 = vand.u32 %v631, 2147483648
        %v659 = vor.u32 1.1754944e-38, %v658
        %v660 = vsel %vm657, %v659, %v655
        %v661 = vmul.f32 %v625, %v660
        %664 = vrot.lane.b32.xlu0 %v449, 112
        %v665 = vpop.permute.xlu0 %664
        %666 = vrot.lane.b32.xlu0 %v452, 112
        %v667 = vpop.permute.xlu0 %666
        %v671 = vsel %vm460, %v646, 0
        %v674 = vsel %vm460, %v661, 0
        %676 = vmatpush.msra.mxu0 0.0
        %677 = vmatpush.msra.mxu0 0.0
        %678 = vmatpush.msra.mxu0 0.0
        %679 = vmatpush.msra.mxu0 0.0
        %680 = vmatpush.msra.mxu0 0.0
        %681 = vmatpush.msra.mxu0 0.0
        %682 = vmatpush.msra.mxu0 0.0
        %683 = vmatpush.msra.mxu0 0.0
        %684 = vmatpush.msra.mxu0 0.0
        %685 = vmatpush.msra.mxu0 0.0
        %686 = vmatpush.msra.mxu0 0.0
        %687 = vmatpush.msra.mxu0 0.0
        %688 = vmatpush.msra.mxu0 0.0
        %689 = vmatpush.msra.mxu0 0.0
        %690 = vmatpush.msra.mxu0 %v667
        %691 = vmatpush.msra.mxu0 %v665
        %692 = vmatmul.f32.gmra.mxu0 %v671
        %v693 = vpop.f32.mrf.mxu0
        %v694 = vadd.f32 0.0, %v693
        %695 = vmatmul.f32.gmra.mxu0 %v674
        %v696 = vpop.f32.mrf.mxu0
        %v697 = vadd.f32 0.0, %v696
        %698 = vdwg.mxu0
        %v699 = vld [vmem:[#allocation8 + $0x10] sm:$0xff]
        %v700 = vld [vmem:[#allocation8 + $0x18] sm:$0xff]
        %v702 = vsel %vm460, %v694, 0
        %v705 = vsel %vm460, %v697, 0
        %707 = vmatpush.msra.mxu0 0.0
        %708 = vmatpush.msra.mxu0 0.0
        %709 = vmatpush.msra.mxu0 0.0
        %710 = vmatpush.msra.mxu0 0.0
        %711 = vmatpush.msra.mxu0 0.0
        %712 = vmatpush.msra.mxu0 0.0
        %713 = vmatpush.msra.mxu0 0.0
        %714 = vmatpush.msra.mxu0 0.0
        %715 = vmatpush.msra.mxu0 0.0
        %716 = vmatpush.msra.mxu0 0.0
        %717 = vmatpush.msra.mxu0 0.0
        %718 = vmatpush.msra.mxu0 0.0
        %719 = vmatpush.msra.mxu0 0.0
        %720 = vmatpush.msra.mxu0 0.0
        %721 = vmatpush.msra.mxu0 %v700
        %722 = vmatpush.msra.mxu0 %v699
        %723 = vmatmul.f32.gmra.mxu0 %v702
        %v724 = vpop.f32.mrf.mxu0
        %v725 = vadd.f32 0.0, %v724
        %726 = vmatmul.f32.gmra.mxu0 %v705
        %v727 = vpop.f32.mrf.mxu0
        %v728 = vadd.f32 0.0, %v727
        %729 = vdwg.mxu0
        %v731 = vsel %vm460, %v566, 0
        %v734 = vsel %vm460, %v569, 0
        %736 = vmatpush.msra.mxu0 0.0
        %737 = vmatpush.msra.mxu0 0.0
        %738 = vmatpush.msra.mxu0 0.0
        %739 = vmatpush.msra.mxu0 0.0
        %740 = vmatpush.msra.mxu0 0.0
        %741 = vmatpush.msra.mxu0 0.0
        %742 = vmatpush.msra.mxu0 0.0
        %743 = vmatpush.msra.mxu0 0.0
        %744 = vmatpush.msra.mxu0 0.0
        %745 = vmatpush.msra.mxu0 0.0
        %746 = vmatpush.msra.mxu0 0.0
        %747 = vmatpush.msra.mxu0 0.0
        %748 = vmatpush.msra.mxu0 0.0
        %749 = vmatpush.msra.mxu0 0.0
        %750 = vmatpush.msra.mxu0 %v572
        %751 = vmatpush.msra.mxu0 %v571
        %752 = vmatmul.f32.gmra.mxu0 %v731
        %v753 = vpop.f32.mrf.mxu0
        %v754 = vadd.f32 %v725, %v753
        %755 = vmatmul.f32.gmra.mxu0 %v734
        %v756 = vpop.f32.mrf.mxu0
        %v757 = vadd.f32 %v728, %v756
        %758 = vdwg.mxu0
        %759 = vrot.lane.b32.xlu0 %v426, 96
        %v760 = vpop.permute.xlu0 %759
        %761 = vrot.lane.b32.xlu0 %v429, 96
        %v762 = vpop.permute.xlu0 %761
        %763 = vrot.lane.b32.xlu0 %v426, 32
        %v764 = vpop.permute.xlu0 %763
        %765 = vrot.lane.b32.xlu0 %v429, 32
        %v766 = vpop.permute.xlu0 %765
        %v767 = vsel %vm460, %v760, 0
        %v769 = vsel %vm460, %v762, 0
        %v771 = vsel %vm460, %v764, 0
        %v773 = vsel %vm460, %v766, 0
        %775 = vmatpush.xpose.msra.mxu0 0.0
        %776 = vmatpush.xpose.msra.mxu0 0.0
        %777 = vmatpush.xpose.msra.mxu0 0.0
        %778 = vmatpush.xpose.msra.mxu0 0.0
        %779 = vmatpush.xpose.msra.mxu0 0.0
        %780 = vmatpush.xpose.msra.mxu0 0.0
        %781 = vmatpush.xpose.msra.mxu0 0.0
        %782 = vmatpush.xpose.msra.mxu0 0.0
        %783 = vmatpush.xpose.msra.mxu0 0.0
        %784 = vmatpush.xpose.msra.mxu0 0.0
        %785 = vmatpush.xpose.msra.mxu0 0.0
        %786 = vmatpush.xpose.msra.mxu0 0.0
        %787 = vmatpush.xpose.msra.mxu0 0.0
        %788 = vmatpush.xpose.msra.mxu0 0.0
        %789 = vmatpush.xpose.msra.mxu0 %v773
        %790 = vmatpush.xpose.msra.mxu0 %v771
        %791 = vmatmul.f32.gmra.mxu0 %v767
        %v792 = vpop.f32.mrf.mxu0
        %v793 = vadd.f32 0.0, %v792
        %794 = vmatmul.f32.gmra.mxu0 %v769
        %v795 = vpop.f32.mrf.mxu0
        %v796 = vadd.f32 0.0, %v795
        %797 = vdwg.mxu0
        %v798 = vmul.f32 %v793, 0.28867513
        %v799 = vmul.f32 %v796, 0.28867513
        %v800 = vsel %vm460, %v798, -inf
        %801 = vmax.xlane.f32.xlu0 %v800
        %v802 = vpop.xlane.xlu0 %801
        %v803 = vsel %vm460, %v799, -inf
        %804 = vmax.xlane.f32.xlu0 %v803
        %v805 = vpop.xlane.xlu0 %804
        %v806 = vsub.f32 %v798, %v802
        %v807 = vsub.f32 %v799, %v805
        %v808 = vmul.f32 %v806, 1.442695
        %v809 = vpow.pop %v808
        %v810 = vmul.f32 %v807, 1.442695
        %v811 = vpow.pop %v810
        %v812 = vsel %vm460, %v809, 0.0
        %813 = vadd.xlane.f32.xlu0 %v812
        %v814 = vpop.xlane.xlu0 %813
        %v815 = vsel %vm460, %v811, 0.0
        %816 = vadd.xlane.f32.xlu0 %v815
        %v817 = vpop.xlane.xlu0 %816
        %v818 = vrcp.pop %v814
        %v819 = vmul.f32 %v814, %v818
        %v820 = vsub.f32 1.0, %v819
        %v821 = vmul.f32 %v818, %v820
        %v822 = vadd.f32 %v818, %v821
        %vm823 = vweird.f32 %v814
        %vm824 = vweird.f32 %v818
        %vm825 = vmor %vm823, %vm824
        %v826 = vsel %vm825, %v818, %v822
        %v827 = vand.u32 2147483647, %v814
        %vm828 = vcmp.eq.f32.partialorder %v827, 8.507059e+37
        %v829 = vand.u32 %v814, 2147483648
        %v830 = vor.u32 1.1754944e-38, %v829
        %v831 = vsel %vm828, %v830, %v826
        %v832 = vmul.f32 %v809, %v831
        %v833 = vrcp.pop %v817
        %v834 = vmul.f32 %v817, %v833
        %v835 = vsub.f32 1.0, %v834
        %v836 = vmul.f32 %v833, %v835
        %v837 = vadd.f32 %v833, %v836
        %vm838 = vweird.f32 %v817
        %vm839 = vweird.f32 %v833
        %vm840 = vmor %vm838, %vm839
        %v841 = vsel %vm840, %v833, %v837
        %v842 = vand.u32 2147483647, %v817
        %vm843 = vcmp.eq.f32.partialorder %v842, 8.507059e+37
        %v844 = vand.u32 %v817, 2147483648
        %v845 = vor.u32 1.1754944e-38, %v844
        %v846 = vsel %vm843, %v845, %v841
        %v847 = vmul.f32 %v811, %v846
        %848 = vrot.lane.b32.xlu0 %v449, 96
        %v849 = vpop.permute.xlu0 %848
        %850 = vrot.lane.b32.xlu0 %v452, 96
        %v851 = vpop.permute.xlu0 %850
        %v855 = vsel %vm460, %v832, 0
        %v858 = vsel %vm460, %v847, 0
        %860 = vmatpush.msra.mxu0 0.0
        %861 = vmatpush.msra.mxu0 0.0
        %862 = vmatpush.msra.mxu0 0.0
        %863 = vmatpush.msra.mxu0 0.0
        %864 = vmatpush.msra.mxu0 0.0
        %865 = vmatpush.msra.mxu0 0.0
        %866 = vmatpush.msra.mxu0 0.0
        %867 = vmatpush.msra.mxu0 0.0
        %868 = vmatpush.msra.mxu0 0.0
        %869 = vmatpush.msra.mxu0 0.0
        %870 = vmatpush.msra.mxu0 0.0
        %871 = vmatpush.msra.mxu0 0.0
        %872 = vmatpush.msra.mxu0 0.0
        %873 = vmatpush.msra.mxu0 0.0
        %874 = vmatpush.msra.mxu0 %v851
        %875 = vmatpush.msra.mxu0 %v849
        %876 = vmatmul.f32.gmra.mxu0 %v855
        %v877 = vpop.f32.mrf.mxu0
        %v878 = vadd.f32 0.0, %v877
        %879 = vmatmul.f32.gmra.mxu0 %v858
        %v880 = vpop.f32.mrf.mxu0
        %v881 = vadd.f32 0.0, %v880
        %882 = vdwg.mxu0
        %v883 = vld [vmem:[#allocation8 + $0x20] sm:$0xff]
        %v884 = vld [vmem:[#allocation8 + $0x28] sm:$0xff]
        %v886 = vsel %vm460, %v878, 0
        %v889 = vsel %vm460, %v881, 0
        %891 = vmatpush.msra.mxu0 0.0
        %892 = vmatpush.msra.mxu0 0.0
        %893 = vmatpush.msra.mxu0 0.0
        %894 = vmatpush.msra.mxu0 0.0
        %895 = vmatpush.msra.mxu0 0.0
        %896 = vmatpush.msra.mxu0 0.0
        %897 = vmatpush.msra.mxu0 0.0
        %898 = vmatpush.msra.mxu0 0.0
        %899 = vmatpush.msra.mxu0 0.0
        %900 = vmatpush.msra.mxu0 0.0
        %901 = vmatpush.msra.mxu0 0.0
        %902 = vmatpush.msra.mxu0 0.0
        %903 = vmatpush.msra.mxu0 0.0
        %904 = vmatpush.msra.mxu0 0.0
        %905 = vmatpush.msra.mxu0 %v884
        %906 = vmatpush.msra.mxu0 %v883
        %907 = vmatmul.f32.gmra.mxu0 %v886
        %v908 = vpop.f32.mrf.mxu0
        %v909 = vadd.f32 0.0, %v908
        %910 = vmatmul.f32.gmra.mxu0 %v889
        %v911 = vpop.f32.mrf.mxu0
        %v912 = vadd.f32 0.0, %v911
        %913 = vdwg.mxu0
        %v914 = vadd.f32 %v754, %v909
        %v915 = vadd.f32 %v757, %v912
        %916 = vrot.lane.b32.xlu0 %v426, 80
        %v917 = vpop.permute.xlu0 %916
        %918 = vrot.lane.b32.xlu0 %v429, 80
        %v919 = vpop.permute.xlu0 %918
        %920 = vrot.lane.b32.xlu0 %v426, 16
        %v921 = vpop.permute.xlu0 %920
        %922 = vrot.lane.b32.xlu0 %v429, 16
        %v923 = vpop.permute.xlu0 %922
        %v924 = vsel %vm460, %v917, 0
        %v926 = vsel %vm460, %v919, 0
        %v928 = vsel %vm460, %v921, 0
        %v930 = vsel %vm460, %v923, 0
        %932 = vmatpush.xpose.msra.mxu0 0.0
        %933 = vmatpush.xpose.msra.mxu0 0.0
        %934 = vmatpush.xpose.msra.mxu0 0.0
        %935 = vmatpush.xpose.msra.mxu0 0.0
        %936 = vmatpush.xpose.msra.mxu0 0.0
        %937 = vmatpush.xpose.msra.mxu0 0.0
        %938 = vmatpush.xpose.msra.mxu0 0.0
        %939 = vmatpush.xpose.msra.mxu0 0.0
        %940 = vmatpush.xpose.msra.mxu0 0.0
        %941 = vmatpush.xpose.msra.mxu0 0.0
        %942 = vmatpush.xpose.msra.mxu0 0.0
        %943 = vmatpush.xpose.msra.mxu0 0.0
        %944 = vmatpush.xpose.msra.mxu0 0.0
        %945 = vmatpush.xpose.msra.mxu0 0.0
        %946 = vmatpush.xpose.msra.mxu0 %v930
        %947 = vmatpush.xpose.msra.mxu0 %v928
        %948 = vmatmul.f32.gmra.mxu0 %v924
        %v949 = vpop.f32.mrf.mxu0
        %v950 = vadd.f32 0.0, %v949
        %951 = vmatmul.f32.gmra.mxu0 %v926
        %v952 = vpop.f32.mrf.mxu0
        %v953 = vadd.f32 0.0, %v952
        %954 = vdwg.mxu0
        %v955 = vmul.f32 %v950, 0.28867513
        %v956 = vmul.f32 %v953, 0.28867513
        %v957 = vsel %vm460, %v955, -inf
        %958 = vmax.xlane.f32.xlu0 %v957
        %v959 = vpop.xlane.xlu0 %958
        %v960 = vsel %vm460, %v956, -inf
        %961 = vmax.xlane.f32.xlu0 %v960
        %v962 = vpop.xlane.xlu0 %961
        %v963 = vsub.f32 %v955, %v959
        %v964 = vsub.f32 %v956, %v962
        %v965 = vmul.f32 %v963, 1.442695
        %v966 = vpow.pop %v965
        %v967 = vmul.f32 %v964, 1.442695
        %v968 = vpow.pop %v967
        %v969 = vsel %vm460, %v966, 0.0
        %970 = vadd.xlane.f32.xlu0 %v969
        %v971 = vpop.xlane.xlu0 %970
        %v972 = vsel %vm460, %v968, 0.0
        %973 = vadd.xlane.f32.xlu0 %v972
        %v974 = vpop.xlane.xlu0 %973
        %v975 = vrcp.pop %v971
        %v976 = vmul.f32 %v971, %v975
        %v977 = vsub.f32 1.0, %v976
        %v978 = vmul.f32 %v975, %v977
        %v979 = vadd.f32 %v975, %v978
        %vm980 = vweird.f32 %v971
        %vm981 = vweird.f32 %v975
        %vm982 = vmor %vm980, %vm981
        %v983 = vsel %vm982, %v975, %v979
        %v984 = vand.u32 2147483647, %v971
        %vm985 = vcmp.eq.f32.partialorder %v984, 8.507059e+37
        %v986 = vand.u32 %v971, 2147483648
        %v987 = vor.u32 1.1754944e-38, %v986
        %v988 = vsel %vm985, %v987, %v983
        %v989 = vmul.f32 %v966, %v988
        %v990 = vrcp.pop %v974
        %v991 = vmul.f32 %v974, %v990
        %v992 = vsub.f32 1.0, %v991
        %v993 = vmul.f32 %v990, %v992
        %v994 = vadd.f32 %v990, %v993
        %vm995 = vweird.f32 %v974
        %vm996 = vweird.f32 %v990
        %vm997 = vmor %vm995, %vm996
        %v998 = vsel %vm997, %v990, %v994
        %v999 = vand.u32 2147483647, %v974
        %vm1000 = vcmp.eq.f32.partialorder %v999, 8.507059e+37
        %v1001 = vand.u32 %v974, 2147483648
        %v1002 = vor.u32 1.1754944e-38, %v1001
        %v1003 = vsel %vm1000, %v1002, %v998
        %v1004 = vmul.f32 %v968, %v1003
        %1005 = vrot.lane.b32.xlu0 %v449, 80
        %v1006 = vpop.permute.xlu0 %1005
        %1007 = vrot.lane.b32.xlu0 %v452, 80
        %v1008 = vpop.permute.xlu0 %1007
        %v1012 = vsel %vm460, %v989, 0
        %v1015 = vsel %vm460, %v1004, 0
        %1017 = vmatpush.msra.mxu0 0.0
        %1018 = vmatpush.msra.mxu0 0.0
        %1019 = vmatpush.msra.mxu0 0.0
        %1020 = vmatpush.msra.mxu0 0.0
        %1021 = vmatpush.msra.mxu0 0.0
        %1022 = vmatpush.msra.mxu0 0.0
        %1023 = vmatpush.msra.mxu0 0.0
        %1024 = vmatpush.msra.mxu0 0.0
        %1025 = vmatpush.msra.mxu0 0.0
        %1026 = vmatpush.msra.mxu0 0.0
        %1027 = vmatpush.msra.mxu0 0.0
        %1028 = vmatpush.msra.mxu0 0.0
        %1029 = vmatpush.msra.mxu0 0.0
        %1030 = vmatpush.msra.mxu0 0.0
        %1031 = vmatpush.msra.mxu0 %v1008
        %1032 = vmatpush.msra.mxu0 %v1006
        %1033 = vmatmul.f32.gmra.mxu0 %v1012
        %v1034 = vpop.f32.mrf.mxu0
        %v1035 = vadd.f32 0.0, %v1034
        %1036 = vmatmul.f32.gmra.mxu0 %v1015
        %v1037 = vpop.f32.mrf.mxu0
        %v1038 = vadd.f32 0.0, %v1037
        %1039 = vdwg.mxu0
        %v1040 = vld [vmem:[#allocation8 + $0x30] sm:$0xff]
        %v1041 = vld [vmem:[#allocation8 + $0x38] sm:$0xff]
        %v1043 = vsel %vm460, %v1035, 0
        %v1046 = vsel %vm460, %v1038, 0
        %1048 = vmatpush.msra.mxu0 0.0
        %1049 = vmatpush.msra.mxu0 0.0
        %1050 = vmatpush.msra.mxu0 0.0
        %1051 = vmatpush.msra.mxu0 0.0
        %1052 = vmatpush.msra.mxu0 0.0
        %1053 = vmatpush.msra.mxu0 0.0
        %1054 = vmatpush.msra.mxu0 0.0
        %1055 = vmatpush.msra.mxu0 0.0
        %1056 = vmatpush.msra.mxu0 0.0
        %1057 = vmatpush.msra.mxu0 0.0
        %1058 = vmatpush.msra.mxu0 0.0
        %1059 = vmatpush.msra.mxu0 0.0
        %1060 = vmatpush.msra.mxu0 0.0
        %1061 = vmatpush.msra.mxu0 0.0
        %1062 = vmatpush.msra.mxu0 %v1041
        %1063 = vmatpush.msra.mxu0 %v1040
        %1064 = vmatmul.f32.gmra.mxu0 %v1043
        %v1065 = vpop.f32.mrf.mxu0
        %v1066 = vadd.f32 0.0, %v1065
        %1067 = vmatmul.f32.gmra.mxu0 %v1046
        %v1068 = vpop.f32.mrf.mxu0
        %v1069 = vadd.f32 0.0, %v1068
        %1070 = vdwg.mxu0
        %v1071 = vadd.f32 %v914, %v1066
        %v1072 = vadd.f32 %v915, %v1069
        %v1073 = vld [vmem:[%s5] sm:$0x1]
        %v1075 = vperm.slane %v1073, 0
        %v1077 = vadd.f32 %v1071, %v1075
        %v1078 = vadd.f32 %v1072, %v1075
        %vm1079 = vcmask 523264
        %1080 = vst.msk [vmem:[%s319] sm:$0xff] %vm1079, %v1077
        %1081 = vst.msk [vmem:[%s319 + $0x8] sm:$0xff] %vm1079, %v1078
        %s1082 = sand.u32 %s164, 1
        %s1083 = scalar_lea.sflag [#allocation4], %s1082
        %s1084 = sand.u32 %s164, 1
        %s1085 = smul.addr %s1084, 16
        %s1086 = scalar_lea.vmem [#allocation10], %s1085
        // Predicated region
        $region61: #{tpu_custom_call.1} parent=43 // pred_check
          %p1087 = pneg %p174
        $region62: #{tpu_custom_call.1} parent=43 // pred_check_branch
          %1089 = sbr.rel (%p1087) target = $region64
        $region63: #{tpu_custom_call.1} parent=43 // pred_region
          %1091 = vsyncadd %s1083, 0
          %s1092 = smul.addr %s25, 2
          %s1093 = smul.addr %s1092, 8
          %s1094 = scalar_lea.hbm %s6, %s1093
          %s1095 = sshll.u32 %s1086, 4
          %s1096 = int_to_ptr.vmem [resolvable:$true] %s1095
          %s1097 = sshll.u32 %s1094, 4
          %s1098 = int_to_ptr.hbm [resolvable:$true] %s1097
          %1103 = dma.vmem_to_hbm [thread:$0]  %s1096, 256, %s1098, %s1083, 128, 128, 8
        $region64: #{tpu_custom_call.1} parent=43 // pred_fallthru
          _
      $region44: #{tpu_custom_call.1} parent=5 // pred_fallthru
        _
      %p1104 = scmp.le.s32.totalorder 2, %s20
      // Predicated region
      $region65: #{tpu_custom_call.1} parent=5 // pred_check
        %p1105 = pneg %p1104
      $region66: #{tpu_custom_call.1} parent=5 // pred_check_branch
        %1107 = sbr.rel (%p1105) target = $region68
      $region67: #{tpu_custom_call.1} parent=5 // pred_region
        %s1108 = ssub.s32 %s20, 2
        // Predicated region
        $region69: #{tpu_custom_call.1} parent=67 // pred_check
          %p1109 = pneg %p180
        $region70: #{tpu_custom_call.1} parent=67 // pred_check_branch
          %1111 = sbr.rel (%p1109) target = $region72
        $region71: #{tpu_custom_call.1} parent=67 // pred_region
          %s1112 = sand.u32 %s165, 1
          %s1113 = scalar_lea.sflag [#allocation4], %s1112
          %s1114 = sand.u32 %s165, 1
          %s1115 = smul.addr %s1114, 16
          %s1116 = scalar_lea.vmem [#allocation10], %s1115
          %1118 = dma.done %s1113, 256
        $region72: #{tpu_custom_call.1} parent=67 // pred_fallthru
          _
      $region68: #{tpu_custom_call.1} parent=5 // pred_fallthru
        _
    $region6: #{tpu_custom_call.1} parent=1 // loop_footer
      %s24 = sadd.s32 1, %s20
    $region7: #{tpu_custom_call.1} parent=1 // loop_footer_branch
      %19 = sbr.rel target = $region3
    $region8: #{tpu_custom_call.1} parent=1 // loop_exit
      _
    %1119 = vsyncpa [#allocation3], 1
    %s1120 = scalar_lea.sflag [#allocation3], 1
    %1121 = vsyncpa %s1120, 1
    %1122 = vsyncpa [#allocation6], 1
    %1123 = vsyncpa [#allocation9], 1
    %1124 = vsyncpa [#allocation4], 1
    %s1125 = scalar_lea.sflag [#allocation4], 1
    %1126 = vsyncpa %s1125, 1

</llo_original>
